<compile_context>
chip_gen: v5e
topology: v5e:2x2
jax: 0.10.0
libtpu: 0.0.40
codegen_flags: <defaults>
</compile_context>

<pallas_src>
import math

import jax
import jax.numpy as jnp
from jax.experimental import pallas as pl
from jax.experimental.pallas import tpu as pltpu


def _conv1x1_sigmoid_kernel(x_ref, w_ref, b_ref, o_ref):
    # x_ref: (1, C, T)  activation tile (one batch element, one spatial tile), VMEM
    # w_ref: (1, C)     1x1-conv weight (out_channels = 1), VMEM-resident
    # b_ref: (1,)       bias scalar, SMEM
    # o_ref: (1, 1, T)  sigmoid(w @ x + b)
    x = x_ref[0]                                            # (C, T)
    w = w_ref[...]                                          # (1, C)
    # Mem-bound op (~0.5 flop/byte): the M=1 MXU matmul is cheap filler here.
    y = jnp.dot(w, x, preferred_element_type=jnp.float32)   # (1, T), f32 accum
    y = y + b_ref[0]
    o_ref[0] = jax.nn.sigmoid(y).astype(o_ref.dtype)


def _round_up(x, m):
    return ((x + m - 1) // m) * m


def _choose_hw_tile(C, HW, itemsize, vmem_budget_bytes=8 * 1024 * 1024):
    """Largest lane-dense (multiple-of-128) spatial tile whose double-buffered
    activation footprint (2 * C * T * itemsize) stays inside a conservative
    budget that fits every generation's default scoped VMEM."""
    t_max = vmem_budget_bytes // (2 * C * itemsize)
    t_max = max(128, (t_max // 128) * 128)
    t_max = min(t_max, 8192)                     # cap per-step work
    return min(_round_up(HW, 128), t_max)


def conv1x1_sigmoid(x, weight, bias):
    """Pallas equivalent of F.sigmoid(nn.Conv2d(C, 1, 1)(x)) for NCHW input.

    x:      (N, C, H, W)
    weight: (1, C, 1, 1)  (PyTorch conv weight layout)
    bias:   (1,)
    returns (N, 1, H, W)
    """
    N, C, H, W = x.shape
    HW = H * W
    T = _choose_hw_tile(C, HW, x.dtype.itemsize)
    HW_pad = _round_up(HW, T)                    # exact tiling, lane-dense tiles
    n_hw = HW_pad // T

    x2 = x.reshape(N, C, HW)
    if HW_pad != HW:
        x2 = jnp.pad(x2, ((0, 0), (0, 0), (0, HW_pad - HW)))
    w2 = weight.reshape(1, C).astype(x.dtype)    # keep activation dtype
    b2 = bias.reshape(1).astype(jnp.float32)     # scalar bias -> SMEM

    out = pl.pallas_call(
        _conv1x1_sigmoid_kernel,
        out_shape=jax.ShapeDtypeStruct((N, 1, HW_pad), x.dtype),
        grid_spec=pltpu.PrefetchScalarGridSpec(
            num_scalar_prefetch=0,
            grid=(N, n_hw),
            in_specs=[
                pl.BlockSpec((1, C, T), lambda n, t: (n, 0, t)),
                pl.BlockSpec((1, C), lambda n, t: (0, 0)),
                pl.BlockSpec(memory_space=pltpu.MemorySpace.SMEM),
            ],
            out_specs=pl.BlockSpec((1, 1, T), lambda n, t: (n, 0, t)),
        ),
        compiler_params=pltpu.CompilerParams(
            dimension_semantics=("parallel", "parallel")),
    )(x2, w2, b2)

    # Crop lane padding (padded lanes hold sigmoid(bias), never exposed).
    return out[:, :, :HW].reshape(N, 1, H, W)


class OutputLayerPallas:
    """JAX/Pallas port of networks/pfpn.py::OutputLayer.

    For each input i (with inplanes[i] channels) applies a 1x1 conv producing a
    single output channel, followed by sigmoid.
    """

    def __init__(self, inplanes, key):
        self.params = []
        for planes in inplanes:
            key, wk, bk = jax.random.split(key, 3)
            # Deterministic init mimicking nn.Conv2d default (kaiming-uniform-ish).
            fan_in = planes  # kernel is 1x1
            bound = 1.0 / math.sqrt(fan_in)
            w = jax.random.uniform(wk, (1, planes, 1, 1), jnp.float32,
                                   minval=-bound, maxval=bound)
            b = jax.random.uniform(bk, (1,), jnp.float32,
                                   minval=-bound, maxval=bound)
            self.params.append((w, b))

    def __call__(self, inputs):
        # Per-level pallas_call (channel counts differ per level); each call is
        # internally tiled/pipelined over (N, HW) so large levels stream at the
        # HBM roofline with bounded VMEM.
        outputs = []
        for (w, b), x in zip(self.params, inputs):
            outputs.append(conv1x1_sigmoid(x, w, b))
        return outputs


def _reference(inputs, params):
    outs = []
    for (w, b), x in zip(params, inputs):
        # 1x1 conv == per-pixel channel contraction
        y = jnp.einsum("nchw,oc->nohw", x, w.reshape(1, -1)) + b.reshape(1, 1, 1, 1)
        outs.append(jax.nn.sigmoid(y))
    return outs


if __name__ == "__main__":
    key = jax.random.PRNGKey(0)
    key, k0, k1, kmod = jax.random.split(key, 4)

    # Two pyramid levels with different channel counts / spatial sizes.
    # Level 1 (HW = 64) exercises the pad-to-128 / crop path.
    inplanes = [4, 8]
    x0 = jax.random.normal(k0, (2, 4, 16, 16), jnp.float32)
    x1 = jax.random.normal(k1, (2, 8, 8, 8), jnp.float32)
    inputs = [x0, x1]

    layer = OutputLayerPallas(inplanes, kmod)
    outs = layer(inputs)
    outs = [jax.block_until_ready(o) for o in outs]

    refs = _reference(inputs, layer.params)
    for o, r in zip(outs, refs):
        assert o.shape == r.shape
        assert jnp.allclose(o, r, atol=1e-5, rtol=1e-5)

    print("KERNEL_OK")
</pallas_src>

<mosaic_0001>
module attributes {stable_mosaic.version = 11 : i64} {
  func.func @_conv1x1_sigmoid_kernel(%arg0: i32, %arg1: i32, %arg2: memref<1x4x256xf32, #tpu.memory_space<vmem>>, %arg3: memref<1x4xf32, #tpu.memory_space<vmem>>, %arg4: memref<1xf32, #tpu.memory_space<smem>>, %arg5: memref<1x1x256xf32, #tpu.memory_space<vmem>>) attributes {dimension_semantics = [#tpu.dimension_semantics<parallel>, #tpu.dimension_semantics<parallel>], iteration_bounds = array<i64: 2, 1>, scalar_prefetch = 0 : i64, scratch_operands = 0 : i64, tpu.core_type = #tpu.core_type<tc>, window_params = [{transform_indices = @transform_0, window_bounds = array<i64: 1, 4, 256>}, {pipeline_mode = #tpu.pipeline_mode<synchronous>, transform_indices = @transform_1, window_bounds = array<i64: 1, 4>}, {transform_indices = @transform_2, window_bounds = array<i64: 1>}, {transform_indices = @transform_3, window_bounds = array<i64: 1, 1, 256>}]} {
    %c0 = arith.constant 0 : index
    %c0_0 = arith.constant 0 : index
    %c0_1 = arith.constant 0 : index
    %0 = vector.load %arg2[%c0, %c0_0, %c0_1] : memref<1x4x256xf32, #tpu.memory_space<vmem>>, vector<1x4x256xf32>
    %1 = vector.shape_cast %0 : vector<1x4x256xf32> to vector<4x256xf32>
    %c0_2 = arith.constant 0 : index
    %c0_3 = arith.constant 0 : index
    %2 = vector.load %arg3[%c0_2, %c0_3] : memref<1x4xf32, #tpu.memory_space<vmem>>, vector<1x4xf32>
    %cst = arith.constant dense<0.000000e+00> : vector<1x256xf32>
    %3 = tpu.matmul %2, %1, %cst {dimension_numbers = #tpu.dot_dimension_numbers<[1], [0], [0], [1], [0, 0, 1, 1], [], []>} : vector<1x4xf32>, vector<4x256xf32>, vector<1x256xf32> -> vector<1x256xf32>
    %c0_4 = arith.constant 0 : index
    %4 = memref.load %arg4[%c0_4] : memref<1xf32, #tpu.memory_space<smem>>
    %5 = vector.broadcast %4 : f32 to vector<1x256xf32>
    %6 = arith.addf %3, %5 : vector<1x256xf32>
    %7 = arith.negf %6 : vector<1x256xf32>
    %8 = math.exp %7 : vector<1x256xf32>
    %cst_5 = arith.constant 1.000000e+00 : f32
    %9 = vector.broadcast %cst_5 : f32 to vector<1x256xf32>
    %10 = arith.addf %9, %8 : vector<1x256xf32>
    %11 = arith.divf %9, %10 : vector<1x256xf32>
    %c0_6 = arith.constant 0 : index
    %c0_7 = arith.constant 0 : index
    %c0_8 = arith.constant 0 : index
    %12 = vector.load %arg5[%c0_6, %c0_7, %c0_8] : memref<1x1x256xf32, #tpu.memory_space<vmem>>, vector<1x1x256xf32>
    %13 = vector.shape_cast %12 : vector<1x1x256xf32> to vector<1x256xf32>
    %14 = vector.shape_cast %11 : vector<1x256xf32> to vector<1x1x256xf32>
    tpu.vector_store %arg5[%c0_6, %c0_7, %c0_8], %14 {strides = array<i32>} : memref<1x1x256xf32, #tpu.memory_space<vmem>>, vector<1x1x256xf32>,
    return
  }
  func.func @transform_0(%arg0: i32, %arg1: i32) -> (i32, i32, i32) {
    %c0_i32 = arith.constant 0 : i32
    %c0_i32_0 = arith.constant 0 : i32
    return %arg0, %c0_i32, %arg1 : i32, i32, i32
  }
  func.func @transform_1(%arg0: i32, %arg1: i32) -> (i32, i32) {
    %c0_i32 = arith.constant 0 : i32
    %c0_i32_0 = arith.constant 0 : i32
    %c0_i32_1 = arith.constant 0 : i32
    return %c0_i32, %c0_i32_0 : i32, i32
  }
  func.func @transform_2(%arg0: i32, %arg1: i32) -> i32 {
    %c0_i32 = arith.constant 0 : i32
    %c0_i32_0 = arith.constant 0 : i32
    return %c0_i32 : i32
  }
  func.func @transform_3(%arg0: i32, %arg1: i32) -> (i32, i32, i32) {
    %c0_i32 = arith.constant 0 : i32
    %c0_i32_0 = arith.constant 0 : i32
    return %arg0, %c0_i32, %arg1 : i32, i32, i32
  }
}

</mosaic_0001>

<llo_original>
// kernel: tpu_custom_call.1
$region0: #{tpu_custom_call.1}
  #allocation0 [shape = 'u32[]', space=smem, size = 0x4, offset = 0x4, fixed_abs, tag = 'smem constant byte address 0x4 - core index']
  #allocation1 [shape = 'u32[72,128]{1,0:T(1,128)}', space=vmem, size = 0x9000, scoped, tag = 'internal scratch']
  #allocation2 [shape = 'f32[1]{0:T(128)S(6)}', space=smem, size = 0x200, scoped, tag = 'scoped memory for tpu_custom_call.1']
  %s0 = inlined_call_operand.hbm [shape: f32[2,4,256], index: 0, kind: input, shape index: {}]
  %s1 = inlined_call_operand.vmem [shape: f32[1,4], index: 1, kind: input, shape index: {}]
  %s2 = inlined_call_operand.<no memory space> [shape: f32[1], index: 2, kind: input, shape index: {}]
  %s3 = inlined_call_operand.hbm [shape: f32[2,1,256], index: 3, kind: output, shape index: {}]
  %s4 = sld [smem:[#allocation0]]
  $region49: #{tpu_custom_call.1} parent=0
    _
  %s6 = ssub.s32 1, %s4
  %s7 = scalar_select 0, %s6, %s4
  %8 = sst [smem:[#allocation2]] %s2
  $region1: #{tpu_custom_call.1} parent=0
    #allocation3 [shape = 'u8[8192]{0}', space=vmem, size = 0x2000, scoped, tag = 'input window, operand 0']
    #allocation4 [shape = 's32[2]{0}', space=sflag, size = 0x8, scoped, tag = 'scoped memory for tpu_custom_call.1']
    #allocation5 [shape = 's32[2]{0}', space=sflag, size = 0x8, scoped, tag = 'scoped memory for tpu_custom_call.1']
    #allocation6 [shape = 'u8[2048]{0}', space=vmem, size = 0x800, scoped, tag = 'output window, operand 0']
    %9 = vsyncpa [#allocation4], 0
    %s10 = scalar_lea.sflag [#allocation4], 1
    %11 = vsyncpa %s10, 0
    %12 = vsyncpa [#allocation5], 0
    %s13 = scalar_lea.sflag [#allocation5], 1
    %14 = vsyncpa %s13, 0
    loop: start=0, step=1, limit=4
    $region2: #{tpu_custom_call.1} parent=1 // loop_pre_header
      _
    $region3: #{tpu_custom_call.1} parent=1 // loop_header
      %s16 = sphi 0, %s20
      %p17 = scmp.ge.s32.totalorder %s16, 4
      %s23 = sphi 0, %s35
      %s24 = sphi 0, %s31
      %s25 = sphi 0, %s23
      %s26 = sphi 0, %s24
      %s27 = sphi 0, %s25
      %s28 = sphi 0, %s26
      %s40 = sphi 0, %s42
      %s43 = sphi 0, %s40
      %s44 = sphi 0, %s43
      %s60 = sphi 0, %s44
      %s64 = sphi 0, %s64
      %s66 = sphi 0, %s64
      %s67 = sphi 0, %s66
      %s81 = sphi 0, %s67
      %s85 = sphi 0, %s85
      %s87 = sphi 0, %s85
      %s88 = sphi 0, %s87
      %s102 = sphi 0, %s88
      %s110 = sphi 0, %s112
      %s113 = sphi 0, %s110
      %s114 = sphi 0, %s113
      %s130 = sphi 0, %s114
    $region4: #{tpu_custom_call.1} parent=1 // loop_header_branch
      %19 = sbr.rel (%p17) target = $region8
    $region5: #{tpu_custom_call.1} parent=1 // loop_body
      %s21 = ssub.s32 %s16, 1
      %s22 = ssub.s32 %s16, 2
      %s29 = sadd.s32 1, %s24
      %p30 = scmp.ge.s32.totalorder %s29, 1
      %s31 = scalar_select %p30, 0, %s29
      %s32 = sadd.s32 1, %s23
      %s33 = scalar_select %p30, %s32, %s23
      %p34 = scmp.ge.s32.totalorder %s33, 2
      %s35 = scalar_select %p34, 0, %s33
      %s36 = ssub.s32 %s23, %s35
      %s37 = ssub.s32 %s24, %s31
      %s38 = sor.u32 %s36, %s37
      %p39 = scmp.eq.s32.totalorder %s38, 0
      %s41 = sadd.s32 %s40, 1
      %s42 = scalar_select %p39, %s40, %s41
      %p45 = pneg %p39
      %p46 = scmp.eq.s32.totalorder %s16, 1
      %p47 = por %p45, %p46
      %p48 = scmp.ne.s32.totalorder %s40, %s43
      %p49 = scmp.eq.s32.totalorder %s16, 0
      %p50 = por %p48, %p49
      %p51 = scmp.ne.s32.totalorder %s40, %s43
      %p52 = scmp.eq.s32.totalorder %s21, 1
      %p53 = por %p51, %p52
      %p54 = scmp.ne.s32.totalorder %s43, %s44
      %p55 = scmp.eq.s32.totalorder %s21, 0
      %p56 = por %p54, %p55
      %p57 = scmp.ne.s32.totalorder %s43, %s44
      %p58 = scmp.eq.s32.totalorder %s22, 1
      %p59 = por %p57, %p58
      %p61 = scmp.ne.s32.totalorder %s44, %s60
      %p62 = scmp.eq.s32.totalorder %s22, 0
      %p63 = por %p61, %p62
      %s65 = sadd.s32 %s64, 1
      %p68 = scmp.eq.s32.totalorder %s16, 1
      %p69 = scmp.ne.s32.totalorder %s64, %s66
      %p70 = scmp.eq.s32.totalorder %s16, 0
      %p71 = por %p69, %p70
      %p72 = scmp.ne.s32.totalorder %s64, %s66
      %p73 = scmp.eq.s32.totalorder %s21, 1
      %p74 = por %p72, %p73
      %p75 = scmp.ne.s32.totalorder %s66, %s67
      %p76 = scmp.eq.s32.totalorder %s21, 0
      %p77 = por %p75, %p76
      %p78 = scmp.ne.s32.totalorder %s66, %s67
      %p79 = scmp.eq.s32.totalorder %s22, 1
      %p80 = por %p78, %p79
      %p82 = scmp.ne.s32.totalorder %s67, %s81
      %p83 = scmp.eq.s32.totalorder %s22, 0
      %p84 = por %p82, %p83
      %s86 = sadd.s32 %s85, 1
      %p89 = scmp.eq.s32.totalorder %s16, 1
      %p90 = scmp.ne.s32.totalorder %s85, %s87
      %p91 = scmp.eq.s32.totalorder %s16, 0
      %p92 = por %p90, %p91
      %p93 = scmp.ne.s32.totalorder %s85, %s87
      %p94 = scmp.eq.s32.totalorder %s21, 1
      %p95 = por %p93, %p94
      %p96 = scmp.ne.s32.totalorder %s87, %s88
      %p97 = scmp.eq.s32.totalorder %s21, 0
      %p98 = por %p96, %p97
      %p99 = scmp.ne.s32.totalorder %s87, %s88
      %p100 = scmp.eq.s32.totalorder %s22, 1
      %p101 = por %p99, %p100
      %p103 = scmp.ne.s32.totalorder %s88, %s102
      %p104 = scmp.eq.s32.totalorder %s22, 0
      %p105 = por %p103, %p104
      %s106 = ssub.s32 %s23, %s35
      %s107 = ssub.s32 %s24, %s31
      %s108 = sor.u32 %s106, %s107
      %p109 = scmp.eq.s32.totalorder %s108, 0
      %s111 = sadd.s32 %s110, 1
      %s112 = scalar_select %p109, %s110, %s111
      %p115 = pneg %p109
      %p116 = scmp.eq.s32.totalorder %s16, 1
      %p117 = por %p115, %p116
      %p118 = scmp.ne.s32.totalorder %s110, %s113
      %p119 = scmp.eq.s32.totalorder %s16, 0
      %p120 = por %p118, %p119
      %p121 = scmp.ne.s32.totalorder %s110, %s113
      %p122 = scmp.eq.s32.totalorder %s21, 1
      %p123 = por %p121, %p122
      %p124 = scmp.ne.s32.totalorder %s113, %s114
      %p125 = scmp.eq.s32.totalorder %s21, 0
      %p126 = por %p124, %p125
      %p127 = scmp.ne.s32.totalorder %s113, %s114
      %p128 = scmp.eq.s32.totalorder %s22, 1
      %p129 = por %p127, %p128
      %p131 = scmp.ne.s32.totalorder %s114, %s130
      %p132 = scmp.eq.s32.totalorder %s22, 0
      %p133 = por %p131, %p132
      %p134 = scmp.le.s32.totalorder 1, %s16
      %p135 = scmp.lt.s32.totalorder %s16, 3
      %p136 = pnand %p134, %p135
      %p137 = pneg %p136
      // Predicated region
      $region9: #{tpu_custom_call.1} parent=5 // pred_check
        _
      $region10: #{tpu_custom_call.1} parent=5 // pred_check_branch
        %139 = sbr.rel (%p136) target = $region12
      $region11: #{tpu_custom_call.1} parent=5 // pred_region
        %s140 = ssub.s32 %s16, 1
        // Predicated region
        $region13: #{tpu_custom_call.1} parent=11 // pred_check
          %p141 = pneg %p77
        $region14: #{tpu_custom_call.1} parent=11 // pred_check_branch
          %143 = sbr.rel (%p141) target = $region16
        $region15: #{tpu_custom_call.1} parent=11 // pred_region
          _
        $region16: #{tpu_custom_call.1} parent=11 // pred_fallthru
          _
        // Predicated region
        $region17: #{tpu_custom_call.1} parent=11 // pred_check
          %p144 = pneg %p98
        $region18: #{tpu_custom_call.1} parent=11 // pred_check_branch
          %146 = sbr.rel (%p144) target = $region20
        $region19: #{tpu_custom_call.1} parent=11 // pred_region
          _
        $region20: #{tpu_custom_call.1} parent=11 // pred_fallthru
          _
      $region12: #{tpu_custom_call.1} parent=5 // pred_fallthru
        _
      %p147 = scmp.lt.s32.totalorder %s16, 2
      // Predicated region
      $region21: #{tpu_custom_call.1} parent=5 // pred_check
        %p148 = pneg %p147
      $region22: #{tpu_custom_call.1} parent=5 // pred_check_branch
        %150 = sbr.rel (%p148) target = $region24
      $region23: #{tpu_custom_call.1} parent=5 // pred_region
        // Predicated region
        $region25: #{tpu_custom_call.1} parent=23 // pred_check
          %p151 = pneg %p50
        $region26: #{tpu_custom_call.1} parent=23 // pred_check_branch
          %153 = sbr.rel (%p151) target = $region28
        $region27: #{tpu_custom_call.1} parent=23 // pred_region
          %s154 = sand.u32 %s40, 1
          %s155 = scalar_lea.sflag [#allocation4], %s154
          %s156 = sand.u32 %s40, 1
          %s157 = smul.addr %s156, 8
          %s158 = scalar_lea.vmem [#allocation3], %s157
          %s159 = smul.u32 2, %s24
          %161 = vsyncadd %s155, 0
          %s162 = smul.addr %s23, 2
          %s163 = sadd.s32 %s159, %s162
          %s164 = smul.addr %s163, 4
          %s165 = scalar_lea.hbm %s0, %s164
          %s167 = sshll.u32 %s165, 4
          %s168 = int_to_ptr.hbm [resolvable:$true] %s167
          %s169 = sshll.u32 %s158, 4
          %s170 = int_to_ptr.vmem [resolvable:$true] %s169
          %172 = dma.hbm_to_vmem [thread:$0]  %s168, 128, %s170, %s155
        $region28: #{tpu_custom_call.1} parent=23 // pred_fallthru
          _
      $region24: #{tpu_custom_call.1} parent=5 // pred_fallthru
        _
      %p173 = scmp.le.s32.totalorder 1, %s16
      %p174 = scmp.lt.s32.totalorder %s16, 3
      %p175 = pnand %p173, %p174
      %p176 = pneg %p175
      // Predicated region
      $region29: #{tpu_custom_call.1} parent=5 // pred_check
        _
      $region30: #{tpu_custom_call.1} parent=5 // pred_check_branch
        %178 = sbr.rel (%p175) target = $region32
      $region31: #{tpu_custom_call.1} parent=5 // pred_region
        %s179 = ssub.s32 %s16, 1
        %s180 = sand.u32 %s43, 1
        %s181 = scalar_lea.sflag [#allocation4], %s180
        %s182 = sand.u32 %s43, 1
        %s183 = smul.addr %s182, 8
        %s184 = scalar_lea.vmem [#allocation3], %s183
        // Predicated region
        $region33: #{tpu_custom_call.1} parent=31 // pred_check
          %p185 = pneg %p56
        $region34: #{tpu_custom_call.1} parent=31 // pred_check_branch
          %187 = sbr.rel (%p185) target = $region36
        $region35: #{tpu_custom_call.1} parent=31 // pred_region
          %189 = dma.done %s181, 128
        $region36: #{tpu_custom_call.1} parent=31 // pred_fallthru
          _
        %s190 = sand.u32 %s43, 1
        %s191 = scalar_lea.sflag [#allocation4], %s190
        %s192 = sand.u32 %s43, 1
        %s193 = smul.addr %s192, 8
        %s194 = scalar_lea.vmem [#allocation3], %s193
        %p195 = pneg %p56
        %p196 = pneg %p53
        %p197 = pneg %p77
        %p198 = pneg %p74
        %p199 = pneg %p98
        %p200 = pneg %p95
        %p201 = pneg %p126
        %p202 = pneg %p123
        %s203 = sand.u32 %s113, 1
        %s204 = scalar_lea.sflag [#allocation5], %s203
        %s205 = sand.u32 %s113, 1
        %s206 = smul.addr %s205, 2
        %s207 = scalar_lea.vmem [#allocation6], %s206
        %s208 = smul.u32 2, %s26
        %s209 = smul.u32 2, %s26
        %v210 = vld [vmem:[%s184] sm:$0xff]
        %v211 = vld [vmem:[%s1] sm:$0x1]
        %s212 = sld [smem:[#allocation2]]
        %v213 = vstv %s212
        %215 = vst [vmem:[#allocation1] ss:$2 sm:$0xff] %v210
        %v216 = vld.sshfl [vmem:[#allocation1] sm:$0xff pattern:$0x75316420]
        %v217 = vld.sshfl [vmem:[#allocation1 + $0x8] sm:$0xff pattern:$0x75316420]
        %vm218 = vcmask 31744
        %v220 = vsel %vm218, %v211, 0
        %vm222 = vcmask 1043456
        %v223 = vsel %vm222, %v216, 0
        %v225 = vsel %vm222, %v217, 0
        %227 = vmatpush.msra.mxu0 0.0
        %228 = vmatpush.msra.mxu0 0.0
        %229 = vmatpush.msra.mxu0 0.0
        %230 = vmatpush.msra.mxu0 0.0
        %231 = vmatpush.msra.mxu0 0.0
        %232 = vmatpush.msra.mxu0 0.0
        %233 = vmatpush.msra.mxu0 0.0
        %234 = vmatpush.msra.mxu0 0.0
        %235 = vmatpush.msra.mxu0 0.0
        %236 = vmatpush.msra.mxu0 0.0
        %237 = vmatpush.msra.mxu0 0.0
        %238 = vmatpush.msra.mxu0 0.0
        %239 = vmatpush.msra.mxu0 0.0
        %240 = vmatpush.msra.mxu0 0.0
        %241 = vmatpush.msra.mxu0 0.0
        %242 = vmatpush.msra.mxu0 %v223
        %243 = vmatmul.f32.gmra.mxu0 %v220
        %v244 = vpop.f32.mrf.mxu0
        %v245 = vadd.f32 %v213, %v244
        %246 = vdwg.mxu0
        %247 = vmatpush.msra.mxu0 0.0
        %248 = vmatpush.msra.mxu0 0.0
        %249 = vmatpush.msra.mxu0 0.0
        %250 = vmatpush.msra.mxu0 0.0
        %251 = vmatpush.msra.mxu0 0.0
        %252 = vmatpush.msra.mxu0 0.0
        %253 = vmatpush.msra.mxu0 0.0
        %254 = vmatpush.msra.mxu0 0.0
        %255 = vmatpush.msra.mxu0 0.0
        %256 = vmatpush.msra.mxu0 0.0
        %257 = vmatpush.msra.mxu0 0.0
        %258 = vmatpush.msra.mxu0 0.0
        %259 = vmatpush.msra.mxu0 0.0
        %260 = vmatpush.msra.mxu0 0.0
        %261 = vmatpush.msra.mxu0 0.0
        %262 = vmatpush.msra.mxu0 %v225
        %263 = vmatmul.f32.gmra.mxu0 %v220
        %v264 = vpop.f32.mrf.mxu0
        %v265 = vadd.f32 %v213, %v264
        %266 = vdwg.mxu0
        %v267 = vxor.u32 %v245, 2147483648
        %v268 = vxor.u32 %v265, 2147483648
        %v269 = vmul.f32 %v267, 1.442695
        %v270 = vpow.pop %v269
        %v271 = vmul.f32 %v268, 1.442695
        %v272 = vpow.pop %v271
        %v273 = vadd.f32 %v270, 1.0
        %v274 = vadd.f32 %v272, 1.0
        %v275 = vrcp.pop %v273
        %v276 = vmul.f32 %v273, %v275
        %v277 = vsub.f32 1.0, %v276
        %v278 = vmul.f32 %v275, %v277
        %v279 = vadd.f32 %v275, %v278
        %vm280 = vweird.f32 %v273
        %vm281 = vweird.f32 %v275
        %vm282 = vmor %vm280, %vm281
        %v283 = vsel %vm282, %v275, %v279
        %v284 = vand.u32 2147483647, %v273
        %vm285 = vcmp.eq.f32.partialorder %v284, 8.507059e+37
        %v286 = vand.u32 %v273, 2147483648
        %v287 = vor.u32 1.1754944e-38, %v286
        %v288 = vsel %vm285, %v287, %v283
        %v289 = vmul.f32 1.0, %v288
        %v290 = vrcp.pop %v274
        %v291 = vmul.f32 %v274, %v290
        %v292 = vsub.f32 1.0, %v291
        %v293 = vmul.f32 %v290, %v292
        %v294 = vadd.f32 %v290, %v293
        %vm295 = vweird.f32 %v274
        %vm296 = vweird.f32 %v290
        %vm297 = vmor %vm295, %vm296
        %v298 = vsel %vm297, %v290, %v294
        %v299 = vand.u32 2147483647, %v274
        %vm300 = vcmp.eq.f32.partialorder %v299, 8.507059e+37
        %v301 = vand.u32 %v274, 2147483648
        %v302 = vor.u32 1.1754944e-38, %v301
        %v303 = vsel %vm300, %v302, %v298
        %v304 = vmul.f32 1.0, %v303
        %v307 = vrot.slane %v304, 7
        %vm308 = vcmask 1040384
        %v309 = vsel %vm308, %v289, %v307
        %v311 = vlaneseq
        %vm312 = vcmp.ge.s32.totalorder %v311, 0
        %vm313 = vcmp.lt.s32.totalorder %v311, 256
        %vm314 = vmand %vm312, %vm313
        %315 = vst.msk [vmem:[%s207] sm:$0x3] %vm314, %v309
        %s316 = sand.u32 %s113, 1
        %s317 = scalar_lea.sflag [#allocation5], %s316
        %s318 = sand.u32 %s113, 1
        %s319 = smul.addr %s318, 2
        %s320 = scalar_lea.vmem [#allocation6], %s319
        // Predicated region
        $region37: #{tpu_custom_call.1} parent=31 // pred_check
          %p321 = pneg %p123
        $region38: #{tpu_custom_call.1} parent=31 // pred_check_branch
          %323 = sbr.rel (%p321) target = $region40
        $region39: #{tpu_custom_call.1} parent=31 // pred_region
          %s324 = smul.u32 2, %s26
          %326 = vsyncadd %s317, 0
          %s327 = smul.addr %s25, 2
          %s328 = sadd.s32 %s324, %s327
          %s329 = scalar_lea.hbm %s3, %s328
          %s331 = sshll.u32 %s320, 4
          %s332 = int_to_ptr.vmem [resolvable:$true] %s331
          %s333 = sshll.u32 %s329, 4
          %s334 = int_to_ptr.hbm [resolvable:$true] %s333
          %336 = dma.vmem_to_hbm [thread:$0]  %s332, 32, %s334, %s317
        $region40: #{tpu_custom_call.1} parent=31 // pred_fallthru
          _
      $region32: #{tpu_custom_call.1} parent=5 // pred_fallthru
        _
      %p337 = scmp.le.s32.totalorder 2, %s16
      // Predicated region
      $region41: #{tpu_custom_call.1} parent=5 // pred_check
        %p338 = pneg %p337
      $region42: #{tpu_custom_call.1} parent=5 // pred_check_branch
        %340 = sbr.rel (%p338) target = $region44
      $region43: #{tpu_custom_call.1} parent=5 // pred_region
        %s341 = ssub.s32 %s16, 2
        // Predicated region
        $region45: #{tpu_custom_call.1} parent=43 // pred_check
          %p342 = pneg %p129
        $region46: #{tpu_custom_call.1} parent=43 // pred_check_branch
          %344 = sbr.rel (%p342) target = $region48
        $region47: #{tpu_custom_call.1} parent=43 // pred_region
          %s345 = sand.u32 %s114, 1
          %s346 = scalar_lea.sflag [#allocation5], %s345
          %s347 = sand.u32 %s114, 1
          %s348 = smul.addr %s347, 2
          %s349 = scalar_lea.vmem [#allocation6], %s348
          %351 = dma.done %s346, 32
        $region48: #{tpu_custom_call.1} parent=43 // pred_fallthru
          _
      $region44: #{tpu_custom_call.1} parent=5 // pred_fallthru
        _
    $region6: #{tpu_custom_call.1} parent=1 // loop_footer
      %s20 = sadd.s32 1, %s16
    $region7: #{tpu_custom_call.1} parent=1 // loop_footer_branch
      %15 = sbr.rel target = $region3
    $region8: #{tpu_custom_call.1} parent=1 // loop_exit
      _
    %352 = vsyncpa [#allocation4], 1
    %s353 = scalar_lea.sflag [#allocation4], 1
    %354 = vsyncpa %s353, 1
    %355 = vsyncpa [#allocation5], 1
    %s356 = scalar_lea.sflag [#allocation5], 1
    %357 = vsyncpa %s356, 1

</llo_original>
